<compile_context>
chip_gen: v5e
topology: v5e:2x2
jax: 0.10.0
libtpu: 0.0.40
codegen_flags: <defaults>
</compile_context>

<pallas_src>
import functools

import jax
import jax.numpy as jnp
from jax import lax
from jax.experimental import pallas as pl
from jax.experimental.pallas import tpu as pltpu

_EPS = 1e-12                       # F.normalize default eps (clamp_min on the norm)
_TARGET_TILE_BYTES = 4 * 1024 * 1024
_MIN_STEPS = 4                     # aim for >= 4 grid steps when the batch allows


def _round_up(n: int, m: int) -> int:
    return -(-n // m) * m


def _vmem_budget():
    """(tile_budget_bytes, vmem_limit_bytes), generation gated."""
    cap = 64 * 1024 * 1024  # conservative default (v7x per-TC VMEM)
    try:
        info = pltpu.get_tpu_info()
        cap = int(getattr(info, "vmem_capacity_bytes", cap))
    except Exception:
        pass
    if cap <= 64 * 1024 * 1024:            # v7x (64 MiB physical VMEM per TC)
        return 12 * 1024 * 1024, 40 * 1024 * 1024
    return 48 * 1024 * 1024, 96 * 1024 * 1024   # v5e / v6e (128 MiB VMEM)


# --------------------------------------------------------------------------- #
# Normal path: whole feature dim in one block, row-blocked grid.
# --------------------------------------------------------------------------- #
def _l2norm_kernel(x_ref, o_ref):
    # x_ref / o_ref: (TB, D) tile.  Reduce in f32, scale with an EUP rsqrt.
    x = x_ref[...].astype(jnp.float32)
    sq_sum = jnp.sum(x * x, axis=-1, keepdims=True)            # (TB, 1)
    # max(sqrt(s), eps) == sqrt(max(s, eps^2)); eps^2 = 1e-24 is a normal f32.
    inv = lax.rsqrt(jnp.maximum(sq_sum, _EPS * _EPS))
    # Re-read x_ref for the scale pass (don't keep the f32 upcast live).
    o_ref[...] = (x_ref[...].astype(jnp.float32) * inv).astype(o_ref.dtype)


# --------------------------------------------------------------------------- #
# Wide-row path: two passes over D chunks (rows too wide for a single tile).
# --------------------------------------------------------------------------- #
def _sumsq_kernel(x_ref, inv_ref, *, d, dc, needs_mask):
    # Grid: (row_blocks [parallel], d_chunks [arbitrary]).
    # inv_ref is a resident (TB, 1) f32 accumulator (same output block across j).
    j = pl.program_id(1)
    x = x_ref[...].astype(jnp.float32)
    if needs_mask:
        col = j * dc + lax.broadcasted_iota(jnp.int32, x.shape, 1)
        x = jnp.where(col < d, x, 0.0)                         # zero OOB feature cols
    part = jnp.sum(x * x, axis=-1, keepdims=True)              # (TB, 1)

    @pl.when(j == 0)
    def _():
        inv_ref[...] = part

    @pl.when(j != 0)
    def _():
        inv_ref[...] = inv_ref[...] + part

    @pl.when(j == pl.num_programs(1) - 1)
    def _():
        inv_ref[...] = lax.rsqrt(jnp.maximum(inv_ref[...], _EPS * _EPS))


def _scale_kernel(x_ref, inv_ref, o_ref):
    o_ref[...] = (x_ref[...].astype(jnp.float32) * inv_ref[...]).astype(o_ref.dtype)


def _l2_normalize_wide(x2d, *, sublane, itemsize, tile_budget, vmem_limit):
    b, d = x2d.shape
    dtype = x2d.dtype
    tb = sublane
    # Feature chunk: multiple of 128, sized so 4 double-buffered (TB, dc) tiles
    # fit the budget.
    dc = (tile_budget // (4 * tb * itemsize)) // 128 * 128
    dc = max(128, min(dc, _round_up(d, 128)))
    needs_mask = (d % dc) != 0

    grid = (pl.cdiv(b, tb), pl.cdiv(d, dc))

    inv = pl.pallas_call(
        functools.partial(_sumsq_kernel, d=d, dc=dc, needs_mask=needs_mask),
        out_shape=jax.ShapeDtypeStruct((b, 1), jnp.float32),
        grid=grid,
        in_specs=[pl.BlockSpec((tb, dc), lambda i, j: (i, j))],
        out_specs=pl.BlockSpec((tb, 1), lambda i, j: (i, 0)),
        compiler_params=pltpu.CompilerParams(
            dimension_semantics=("parallel", "arbitrary"),
            vmem_limit_bytes=vmem_limit,
        ),
        cost_estimate=pl.CostEstimate(
            flops=int(2 * b * d), transcendentals=int(b),
            bytes_accessed=int(b * d * itemsize)),
    )(x2d)

    out = pl.pallas_call(
        _scale_kernel,
        out_shape=jax.ShapeDtypeStruct((b, d), dtype),
        grid=grid,
        in_specs=[pl.BlockSpec((tb, dc), lambda i, j: (i, j)),
                  pl.BlockSpec((tb, 1), lambda i, j: (i, 0))],
        out_specs=pl.BlockSpec((tb, dc), lambda i, j: (i, j)),
        compiler_params=pltpu.CompilerParams(
            dimension_semantics=("parallel", "parallel"),
            vmem_limit_bytes=vmem_limit,
        ),
        cost_estimate=pl.CostEstimate(
            flops=int(b * d), transcendentals=0,
            bytes_accessed=int(2 * b * d * itemsize)),
    )(x2d, inv)
    return out


# --------------------------------------------------------------------------- #
# Public wrapper (== PyTorch L2NormalizeLayer.forward)
# --------------------------------------------------------------------------- #
def l2_normalize(x: jax.Array) -> jax.Array:
    """Flatten non-batch dims and L2-normalize each row."""
    b = x.shape[0]
    x2d = x.reshape(b, -1)                      # metadata-only reshape
    d = x2d.shape[1]
    dtype = x2d.dtype
    itemsize = jnp.dtype(dtype).itemsize
    sublane = 8 if itemsize >= 4 else (16 if itemsize == 2 else 32)

    tile_budget, vmem_limit = _vmem_budget()

    # Rows too wide for even a single sublane-high tile -> two-pass D-split path.
    if 4 * sublane * d * itemsize > tile_budget:
        return _l2_normalize_wide(x2d, sublane=sublane, itemsize=itemsize,
                                  tile_budget=tile_budget, vmem_limit=vmem_limit)

    row_bytes = d * itemsize
    rb = _round_up(b, sublane)

    # Target ~4 MiB tiles, capped by the VMEM budget (2 in + 2 out buffers).
    tb_target = max(sublane, (_TARGET_TILE_BYTES // row_bytes) // sublane * sublane)
    tb_vmem = max(sublane, (tile_budget // (4 * row_bytes)) // sublane * sublane)
    tb = min(tb_target, tb_vmem)
    # Keep the grid >= _MIN_STEPS deep when the batch allows (v7x megacore + pipelining).
    if rb >= _MIN_STEPS * sublane:
        tb = min(tb, max(sublane, (rb // _MIN_STEPS) // sublane * sublane))
    tb = max(sublane, min(tb, rb))

    steps = pl.cdiv(b, tb)
    tile_bytes = tb * row_bytes

    # Deeper pipelining only helps in the tiny-tile / many-step regime.
    bspec_kw = {}
    if steps >= 4 and tile_bytes <= 1 * 1024 * 1024:
        bspec_kw = dict(pipeline_mode=pl.Buffered(3))

    out = pl.pallas_call(
        _l2norm_kernel,
        out_shape=jax.ShapeDtypeStruct((b, d), dtype),
        grid=(steps,),
        in_specs=[pl.BlockSpec((tb, d), lambda i: (i, 0), **bspec_kw)],
        out_specs=pl.BlockSpec((tb, d), lambda i: (i, 0), **bspec_kw),
        compiler_params=pltpu.CompilerParams(
            dimension_semantics=("parallel",),   # row blocks shard across TCs on v7x
            vmem_limit_bytes=vmem_limit,
        ),
        cost_estimate=pl.CostEstimate(
            flops=int(3 * b * d), transcendentals=int(b),
            bytes_accessed=int(2 * b * d * itemsize)),
    )(x2d)
    return out


def _ref_l2_normalize(x: jax.Array) -> jax.Array:
    x2d = x.reshape(x.shape[0], -1).astype(jnp.float32)
    n = jnp.sqrt(jnp.sum(x2d * x2d, axis=1, keepdims=True))
    return x2d / jnp.maximum(n, _EPS)


if __name__ == "__main__":
    key = jax.random.PRNGKey(0)

    # 1) Main test: small NCHW input (conv-style feature map).
    x = jax.random.normal(key, (2, 4, 16, 16), dtype=jnp.float32)
    y = jax.block_until_ready(l2_normalize(x))
    ref = _ref_l2_normalize(x)
    assert y.shape == (2, 4 * 16 * 16)
    row_norms = jnp.sqrt(jnp.sum(y.astype(jnp.float32) ** 2, axis=1))
    assert bool(jnp.all(jnp.abs(row_norms - 1.0) < 1e-5))
    assert bool(jnp.max(jnp.abs(y.astype(jnp.float32) - ref)) < 1e-5)

    # 2) Misaligned shape: exercises the partial last row block (B % 8 != 0) and the
    #    non-128-multiple feature dim (masked tail stores) with no pad/slice.
    k2 = jax.random.PRNGKey(1)
    x2 = jax.random.normal(k2, (3, 5, 9), dtype=jnp.float32)
    y2 = jax.block_until_ready(l2_normalize(x2))
    assert y2.shape == (3, 45)
    assert bool(jnp.max(jnp.abs(y2.astype(jnp.float32) - _ref_l2_normalize(x2))) < 1e-5)

    # 3) Wide-row (two-pass) path, forced with a tiny tile budget so D is chunked
    #    (including a masked partial last feature chunk).
    k3 = jax.random.PRNGKey(2)
    x3 = jax.random.normal(k3, (3, 700), dtype=jnp.float32)
    y3 = jax.block_until_ready(
        _l2_normalize_wide(x3, sublane=8, itemsize=4,
                           tile_budget=4 * 8 * 4 * 300,      # -> dc = 256
                           vmem_limit=_vmem_budget()[1]))
    assert y3.shape == (3, 700)
    assert bool(jnp.max(jnp.abs(y3.astype(jnp.float32) - _ref_l2_normalize(x3))) < 1e-5)

    print("KERNEL_OK")
</pallas_src>

<mosaic_0001>
module attributes {stable_mosaic.version = 11 : i64} {
  func.func @_l2norm_kernel(%arg0: i32, %arg1: memref<8x1024xf32, #tpu.memory_space<vmem>>, %arg2: memref<8x1024xf32, #tpu.memory_space<vmem>>) attributes {dimension_semantics = [#tpu.dimension_semantics<parallel>], iteration_bounds = array<i64: 1>, scalar_prefetch = 0 : i64, scratch_operands = 0 : i64, tpu.core_type = #tpu.core_type<tc>, window_params = [{transform_indices = @transform_0, window_bounds = array<i64: 8, 1024>}, {transform_indices = @transform_1, window_bounds = array<i64: 8, 1024>}]} {
    %c0 = arith.constant 0 : index
    %c0_0 = arith.constant 0 : index
    %0 = vector.load %arg1[%c0, %c0_0] : memref<8x1024xf32, #tpu.memory_space<vmem>>, vector<8x1024xf32>
    %1 = arith.mulf %0, %0 : vector<8x1024xf32>
    %cst = arith.constant dense<0.000000e+00> : vector<8xf32>
    %2 = vector.multi_reduction <add>, %1, %cst [1] : vector<8x1024xf32> to vector<8xf32>
    %3 = vector.shape_cast %2 : vector<8xf32> to vector<8x1xf32>
    %cst_1 = arith.constant 1.000000e-24 : f32
    %4 = vector.broadcast %cst_1 : f32 to vector<8x1xf32>
    %5 = arith.maximumf %3, %4 : vector<8x1xf32>
    %6 = math.rsqrt %5 : vector<8x1xf32>
    %c0_2 = arith.constant 0 : index
    %c0_3 = arith.constant 0 : index
    %7 = vector.load %arg1[%c0_2, %c0_3] : memref<8x1024xf32, #tpu.memory_space<vmem>>, vector<8x1024xf32>
    %8 = vector.broadcast %6 : vector<8x1xf32> to vector<8x1024xf32>
    %9 = arith.mulf %7, %8 : vector<8x1024xf32>
    %c0_4 = arith.constant 0 : index
    %c0_5 = arith.constant 0 : index
    %10 = vector.load %arg2[%c0_4, %c0_5] : memref<8x1024xf32, #tpu.memory_space<vmem>>, vector<8x1024xf32>
    tpu.vector_store %arg2[%c0_4, %c0_5], %9 {strides = array<i32>} : memref<8x1024xf32, #tpu.memory_space<vmem>>, vector<8x1024xf32>,
    return
  }
  func.func @transform_0(%arg0: i32) -> (i32, i32) {
    %c0_i32 = arith.constant 0 : i32
    %c0_i32_0 = arith.constant 0 : i32
    return %arg0, %c0_i32 : i32, i32
  }
  func.func @transform_1(%arg0: i32) -> (i32, i32) {
    %c0_i32 = arith.constant 0 : i32
    %c0_i32_0 = arith.constant 0 : i32
    return %arg0, %c0_i32 : i32, i32
  }
}

</mosaic_0001>

<llo_original>
// kernel: tpu_custom_call.1
$region0: #{tpu_custom_call.1}
  #allocation0 [shape = 'u32[]', space=smem, size = 0x4, offset = 0x4, fixed_abs, tag = 'smem constant byte address 0x4 - core index']
  #allocation1 [shape = 'u32[72,128]{1,0:T(1,128)}', space=vmem, size = 0x9000, scoped, tag = 'internal scratch']
  %s0 = inlined_call_operand.hbm [shape: f32[2,1024], index: 0, kind: input, shape index: {}]
  %s1 = inlined_call_operand.hbm [shape: f32[2,1024], index: 1, kind: output, shape index: {}]
  %s2 = sld [smem:[#allocation0]]
  $region18: #{tpu_custom_call.1} parent=0
    _
  %s4 = ssub.s32 1, %s2
  %s5 = scalar_select 0, %s4, %s2
  $region1: #{tpu_custom_call.1} parent=0
    #allocation2 [shape = 'u8[32768]{0}', space=vmem, size = 0x8000, scoped, tag = 'input window, operand 0, single buffered']
    #allocation3 [shape = 's32[1]{0}', space=sflag, size = 0x4, scoped, tag = 'scoped memory for tpu_custom_call.1']
    #allocation4 [shape = 's32[1]{0}', space=sflag, size = 0x4, scoped, tag = 'scoped memory for tpu_custom_call.1']
    #allocation5 [shape = 'u8[32768]{0}', space=vmem, size = 0x8000, scoped, tag = 'output window, operand 0, single buffered']
    %6 = vsyncpa [#allocation3], 0
    %7 = vsyncpa [#allocation4], 0
    // Predicated region
    $region2: #{tpu_custom_call.1} parent=1 // pred_check
      _
    $region3: #{tpu_custom_call.1} parent=1 // pred_check_branch
      %9 = sbr.rel (0) target = $region5
    $region4: #{tpu_custom_call.1} parent=1 // pred_region
      %11 = vsyncadd [#allocation3], 768
      %s12 = sshll.u32 %s0, 4
      %s13 = int_to_ptr.hbm [resolvable:$true] %s12
      %s14 = sshll.u32 [#allocation2], 4
      %s15 = int_to_ptr.vmem [resolvable:$true] %s14
      %20 = dma.hbm_to_vmem [thread:$0]  %s13, 256, %s15, [#allocation3], 256, 256, 16
    $region5: #{tpu_custom_call.1} parent=1 // pred_fallthru
      _
    // Predicated region
    $region6: #{tpu_custom_call.1} parent=1 // pred_check
      _
    $region7: #{tpu_custom_call.1} parent=1 // pred_check_branch
      %22 = sbr.rel (0) target = $region9
    $region8: #{tpu_custom_call.1} parent=1 // pred_region
      %24 = dma.done [#allocation3], 1024
    $region9: #{tpu_custom_call.1} parent=1 // pred_fallthru
      _
    %v25 = vld [vmem:[#allocation2] sm:$0xff]
    %v26 = vld [vmem:[#allocation2 + $0x8] sm:$0xff]
    %v27 = vld [vmem:[#allocation2 + $0x10] sm:$0xff]
    %v28 = vld [vmem:[#allocation2 + $0x18] sm:$0xff]
    %v29 = vld [vmem:[#allocation2 + $0x20] sm:$0xff]
    %v30 = vld [vmem:[#allocation2 + $0x28] sm:$0xff]
    %v31 = vld [vmem:[#allocation2 + $0x30] sm:$0xff]
    %v32 = vld [vmem:[#allocation2 + $0x38] sm:$0xff]
    %v33 = vmul.f32 %v25, %v25
    %v34 = vmul.f32 %v26, %v26
    %v35 = vmul.f32 %v27, %v27
    %v36 = vmul.f32 %v28, %v28
    %v37 = vmul.f32 %v29, %v29
    %v38 = vmul.f32 %v30, %v30
    %v39 = vmul.f32 %v31, %v31
    %v40 = vmul.f32 %v32, %v32
    %49 = vst [vmem:[#allocation1] ss:$4 sm:$0xff] %v33
    %s50 = scalar_lea.vmem [#allocation1], 1
    %51 = vst [vmem:[%s50] ss:$4 sm:$0xff] %v35
    %s52 = scalar_lea.vmem [#allocation1], 2
    %53 = vst [vmem:[%s52] ss:$4 sm:$0xff] %v37
    %s54 = scalar_lea.vmem [#allocation1], 3
    %55 = vst [vmem:[%s54] ss:$4 sm:$0xff] %v39
    %s56 = scalar_lea.vmem [#allocation1], 32
    %57 = vst [vmem:[%s56] ss:$4 sm:$0xff] %v34
    %s58 = scalar_lea.vmem [#allocation1], 33
    %59 = vst [vmem:[%s58] ss:$4 sm:$0xff] %v36
    %s60 = scalar_lea.vmem [#allocation1], 34
    %61 = vst [vmem:[%s60] ss:$4 sm:$0xff] %v38
    %s62 = scalar_lea.vmem [#allocation1], 35
    %63 = vst [vmem:[%s62] ss:$4 sm:$0xff] %v40
    %v64 = vld.sshfl [vmem:[#allocation1] sm:$0xff pattern:$0x73625140]
    %v65 = vld.sshfl [vmem:[#allocation1 + $0x8] sm:$0xff pattern:$0x73625140]
    %v66 = vld.sshfl [vmem:[#allocation1 + $0x10] sm:$0xff pattern:$0x73625140]
    %v67 = vld.sshfl [vmem:[#allocation1 + $0x18] sm:$0xff pattern:$0x73625140]
    %v68 = vld.sshfl [vmem:[#allocation1 + $0x20] sm:$0xff pattern:$0x73625140]
    %v69 = vld.sshfl [vmem:[#allocation1 + $0x28] sm:$0xff pattern:$0x73625140]
    %v70 = vld.sshfl [vmem:[#allocation1 + $0x30] sm:$0xff pattern:$0x73625140]
    %v71 = vld.sshfl [vmem:[#allocation1 + $0x38] sm:$0xff pattern:$0x73625140]
    %v80 = vadd.f32 %v64, %v65
    %v81 = vadd.f32 %v80, %v66
    %v82 = vadd.f32 %v81, %v67
    %v83 = vadd.f32 %v82, %v68
    %v84 = vadd.f32 %v83, %v69
    %v85 = vadd.f32 %v84, %v70
    %v86 = vadd.f32 %v85, %v71
    %87 = vadd.xlane.f32.xlu0 %v86
    %v88 = vpop.xlane.xlu0 %87
    %v89 = vmax.f32 %v88, 1e-24
    %v90 = vrsqrt.pop %v89
    %v91 = vmul.f32 %v90, %v89
    %v92 = vmul.f32 %v91, %v90
    %v93 = vmul.f32 0.5, %v92
    %v94 = vsub.f32 1.5, %v93
    %v95 = vmul.f32 %v90, %v94
    %vm96 = vweird.f32 %v89
    %vm97 = vweird.f32 %v90
    %vm98 = vmor %vm96, %vm97
    %v99 = vsel %vm98, %v90, %v95
    %v102 = vunpack.c.l.s4 269488144
    %v103 = vunpack.c.0.s8 %v102
    %v104 = vperm.slane %v99, %v103
    %v106 = vunpack.c.l.s4 842150450
    %v107 = vunpack.c.0.s8 %v106
    %v108 = vperm.slane %v99, %v107
    %v110 = vunpack.c.l.s4 1414812756
    %v111 = vunpack.c.0.s8 %v110
    %v112 = vperm.slane %v99, %v111
    %v114 = vunpack.c.l.s4 1987475062
    %v115 = vunpack.c.0.s8 %v114
    %v116 = vperm.slane %v99, %v115
    %v121 = vmul.f32 %v25, %v104
    %v122 = vmul.f32 %v26, %v104
    %v123 = vmul.f32 %v27, %v108
    %v124 = vmul.f32 %v28, %v108
    %v125 = vmul.f32 %v29, %v112
    %v126 = vmul.f32 %v30, %v112
    %v127 = vmul.f32 %v31, %v116
    %v128 = vmul.f32 %v32, %v116
    %129 = vst [vmem:[#allocation5] sm:$0xff] %v121
    %130 = vst [vmem:[#allocation5 + $0x8] sm:$0xff] %v122
    %131 = vst [vmem:[#allocation5 + $0x10] sm:$0xff] %v123
    %132 = vst [vmem:[#allocation5 + $0x18] sm:$0xff] %v124
    %133 = vst [vmem:[#allocation5 + $0x20] sm:$0xff] %v125
    %134 = vst [vmem:[#allocation5 + $0x28] sm:$0xff] %v126
    %135 = vst [vmem:[#allocation5 + $0x30] sm:$0xff] %v127
    %136 = vst [vmem:[#allocation5 + $0x38] sm:$0xff] %v128
    // Predicated region
    $region10: #{tpu_custom_call.1} parent=1 // pred_check
      _
    $region11: #{tpu_custom_call.1} parent=1 // pred_check_branch
      %138 = sbr.rel (0) target = $region13
    $region12: #{tpu_custom_call.1} parent=1 // pred_region
      %140 = vsyncadd [#allocation4], 768
      %s141 = sshll.u32 [#allocation5], 4
      %s142 = int_to_ptr.vmem [resolvable:$true] %s141
      %s143 = sshll.u32 %s1, 4
      %s144 = int_to_ptr.hbm [resolvable:$true] %s143
      %149 = dma.vmem_to_hbm [thread:$0]  %s142, 256, %s144, [#allocation4], 256, 256, 16
    $region13: #{tpu_custom_call.1} parent=1 // pred_fallthru
      _
    // Predicated region
    $region14: #{tpu_custom_call.1} parent=1 // pred_check
      _
    $region15: #{tpu_custom_call.1} parent=1 // pred_check_branch
      %151 = sbr.rel (0) target = $region17
    $region16: #{tpu_custom_call.1} parent=1 // pred_region
      %153 = dma.done [#allocation4], 1024
    $region17: #{tpu_custom_call.1} parent=1 // pred_fallthru
      _
    %154 = vsyncpa [#allocation3], 1
    %155 = vsyncpa [#allocation4], 1

</llo_original>
